<compile_context>
chip_gen: v5e
topology: v5e:2x2
jax: 0.10.0
libtpu: 0.0.40
codegen_flags: <defaults>
</compile_context>

<pallas_src>
import functools

import jax
import jax.numpy as jnp
from jax.experimental import pallas as pl
from jax.experimental.pallas import tpu as pltpu


def _round_up(x, m):
    return (x + m - 1) // m * m


# ---------------------------------------------------------------------------
# Fused kernel: encoder conv (grouped dense matmuls against a shared
# kron(I_group, Wc) block) + mlp_1stpart + mlp_2ndpart + probe.
# Weights arrive pre-transposed to [K, N] in bf16; biases are [1, N] f32.
# u | v | z_pad are packed into a single lane-dense [TM, 128*k] f32 output.
# ---------------------------------------------------------------------------
def _fused_forward_kernel(patches_ref, wc_ref, bc_ref, w1_ref, b1_ref,
                          w2_ref, b2_ref, w3_ref, b3_ref, out_ref,
                          *, n_groups, group_k):
    # Encoder: short unrolled loop of dense group matmuls against one shared
    # kron(I_group, Wc) block; each group's output is a full 128-lane slab so
    # the concat below is vreg-aligned and the feature slab stays lane-dense
    # in (pos-major, channel-minor) order.
    pat = patches_ref[...]                       # [TM, P*k_pad] bf16
    wc = wc_ref[...]                             # [group_k, group_n] bf16
    feats = [
        jnp.dot(pat[:, g * group_k:(g + 1) * group_k], wc,
                preferred_element_type=jnp.float32)
        for g in range(n_groups)
    ]
    f = jnp.concatenate(feats, axis=-1) + bc_ref[...]
    f = jnp.maximum(f, 0.0)

    # mlp_1stpart: Linear + ReLU
    u = jnp.dot(f.astype(jnp.bfloat16), w1_ref[...],
                preferred_element_type=jnp.float32) + b1_ref[...]
    u = jnp.maximum(u, 0.0)

    # mlp_2ndpart: Linear + ReLU
    v = jnp.dot(u.astype(jnp.bfloat16), w2_ref[...],
                preferred_element_type=jnp.float32) + b2_ref[...]
    v = jnp.maximum(v, 0.0)

    # probe (output dim zero-padded so the packed store is a full lane width)
    z = jnp.dot(v.astype(jnp.bfloat16), w3_ref[...],
                preferred_element_type=jnp.float32) + b3_ref[...]

    # single unmasked, lane-dense store:  u | v | z_pad
    out_ref[...] = jnp.concatenate([u, v, z], axis=-1)


# ---------------------------------------------------------------------------
# Host-side glue
# ---------------------------------------------------------------------------
def _im2col_nchw(x, kh, kw, stride, pad, k_pad):
    """x: [N, C, H, W] -> [N, OH*OW*k_pad]; per position the patch layout is
    (C-major, (kh,kw)-minor), zero-padded to k_pad, matching
    conv_w.reshape(C_out, C_in*kh*kw)."""
    n, c, h, w = x.shape
    oh = (h + 2 * pad - kh) // stride + 1
    ow = (w + 2 * pad - kw) // stride + 1
    xp = jnp.pad(x, ((0, 0), (0, 0), (pad, pad), (pad, pad)))
    cols = []
    for i in range(kh):
        for j in range(kw):
            cols.append(xp[:, :, i:i + stride * oh:stride,
                              j:j + stride * ow:stride])      # [N, C, OH, OW]
    pt = jnp.stack(cols, axis=2)                  # [N, C, kh*kw, OH, OW]
    pt = pt.transpose(0, 3, 4, 1, 2)              # [N, OH, OW, C, kh*kw]
    pt = pt.reshape(n, oh * ow, c * kh * kw)      # [N, P, K]
    pt = jnp.pad(pt, ((0, 0), (0, 0), (0, k_pad - c * kh * kw)))
    return pt.reshape(n, oh * ow * k_pad), oh, ow
# TODO(synk): build the im2col patches in-kernel from bf16 [TM, C, H, W] image
# tiles (cuts HBM read traffic ~2.7x once the kernel is HBM-bound).


@functools.partial(jax.jit, static_argnames=("tile_m",))
def init_encoder_mlp_forward(images, params, *, tile_m=512):
    """images: [N, C, H, W] float32.  Returns (z, (u, v))."""
    conv_w, conv_b = params["conv_w"], params["conv_b"]
    w1, b1 = params["w1"], params["b1"]
    w2, b2 = params["w2"], params["b2"]
    w3, b3 = params["w3"], params["b3"]

    n = images.shape[0]
    c_out, c_in, kh, kw = conv_w.shape
    k_raw = c_in * kh * kw
    k_pad = _round_up(k_raw, 32)                  # 27 -> 32 aligned contraction

    patches, oh, ow = _im2col_nchw(images, kh, kw, 2, 1, k_pad)
    p = oh * ow
    feat_dim = p * c_out                          # lane-dense feature width

    # Conv as grouped dense matmuls: group_pos positions per matmul so each
    # group's output slab is exactly 128 lanes wide; fall back to one group
    # (old block-diagonal form) if the shapes don't allow it.
    if 128 % c_out == 0 and p % (128 // c_out) == 0:
        group_pos = 128 // c_out
    else:
        group_pos = p
    n_groups = p // group_pos
    group_k = group_pos * k_pad

    # ---- one-time weight massaging (host-side, fused by XLA) ----
    wc_kn = jnp.pad(conv_w.reshape(c_out, k_raw),
                    ((0, 0), (0, k_pad - k_raw))).T           # [k_pad, c_out]
    wc_grp = jnp.kron(jnp.eye(group_pos, dtype=jnp.float32),
                      wc_kn).astype(jnp.bfloat16)    # [group_k, group_pos*c_out]
    bc_big = jnp.tile(conv_b, p).reshape(1, feat_dim)

    # permute W1 columns to absorb the NCHW-flatten -> (pos, chan) layout;
    # any change to the conv lowering must preserve pos*c_out + ch ordering.
    g_to_f = (jnp.arange(c_out)[None, :] * p
              + jnp.arange(p)[:, None]).reshape(-1)           # [feat_dim]
    w1_t = w1[:, g_to_f].T.astype(jnp.bfloat16)               # [feat_dim, U]
    w2_t = w2.T.astype(jnp.bfloat16)                          # [U, V]

    u_dim, v_dim, nc = w1.shape[0], w2.shape[0], w3.shape[0]
    out_w = _round_up(u_dim + v_dim + nc, 128)
    z_pad = out_w - u_dim - v_dim
    w3_t = jnp.pad(w3, ((0, z_pad - nc), (0, 0))).T.astype(jnp.bfloat16)
    b3_p = jnp.pad(b3, (0, z_pad - nc)).reshape(1, z_pad)
    b1_r = b1.reshape(1, u_dim)
    b2_r = b2.reshape(1, v_dim)

    # ---- batch tiling: 16-row aligned (bf16 sublane packing); keep >= 2 grid
    # steps when the batch allows it so both v7x TensorCores get work ----
    tm = min(tile_m, _round_up(n, 16))
    if n >= 32 and _round_up(n, tm) // tm < 2:
        tm = _round_up((n + 1) // 2, 16)
    n_pad = _round_up(n, tm)
    patches = jnp.pad(patches.astype(jnp.bfloat16), ((0, n_pad - n), (0, 0)))
    grid = (n_pad // tm,)

    def full(a):
        return pl.BlockSpec(a.shape, lambda i: (0,) * a.ndim)

    out = pl.pallas_call(
        functools.partial(_fused_forward_kernel,
                          n_groups=n_groups, group_k=group_k),
        out_shape=jax.ShapeDtypeStruct((n_pad, out_w), jnp.float32),
        grid=grid,
        in_specs=[pl.BlockSpec((tm, p * k_pad), lambda i: (i, 0)),
                  full(wc_grp), full(bc_big),
                  full(w1_t), full(b1_r),
                  full(w2_t), full(b2_r),
                  full(w3_t), full(b3_p)],
        out_specs=pl.BlockSpec((tm, out_w), lambda i: (i, 0)),
        compiler_params=pltpu.CompilerParams(
            dimension_semantics=("parallel",),
            vmem_limit_bytes=32 * 1024 * 1024),
    )(patches, wc_grp, bc_big, w1_t, b1_r, w2_t, b2_r, w3_t, b3_p)

    u = out[:n, 0:u_dim]
    v = out[:n, u_dim:u_dim + v_dim]
    z = out[:n, u_dim + v_dim:u_dim + v_dim + nc]
    # u.clone().detach(), v.clone().detach() -> plain arrays in JAX.
    return z, (u, v)


# ---------------------------------------------------------------------------
# Parameters + pure-JAX reference (for validation)
# ---------------------------------------------------------------------------
def make_params(key, in_channels=3, conv_channels=8, spatial=16,
                mlp_sizes=(64, 32), num_classes=10):
    oh = spatial // 2
    num_features = conv_channels * oh * oh
    ks = jax.random.split(key, 8)

    def lin_init(kw_, kb_, fan_out, fan_in):
        bound = 1.0 / (fan_in ** 0.5)
        w = jax.random.uniform(kw_, (fan_out, fan_in), jnp.float32, -bound, bound)
        b = jax.random.uniform(kb_, (fan_out,), jnp.float32, -bound, bound)
        return w, b

    cb = 1.0 / (in_channels * 9) ** 0.5
    conv_w = jax.random.uniform(ks[0], (conv_channels, in_channels, 3, 3),
                                jnp.float32, -cb, cb)
    conv_b = jax.random.uniform(ks[1], (conv_channels,), jnp.float32, -cb, cb)
    w1, b1 = lin_init(ks[2], ks[3], mlp_sizes[0], num_features)
    w2, b2 = lin_init(ks[4], ks[5], mlp_sizes[1], mlp_sizes[0])
    w3, b3 = lin_init(ks[6], ks[7], num_classes, mlp_sizes[1])
    return dict(conv_w=conv_w, conv_b=conv_b, w1=w1, b1=b1,
                w2=w2, b2=b2, w3=w3, b3=b3)


def reference_forward(images, params):
    out = jax.lax.conv_general_dilated(
        images, params["conv_w"], window_strides=(2, 2),
        padding=((1, 1), (1, 1)),
        dimension_numbers=("NCHW", "OIHW", "NCHW"))
    out = jnp.maximum(out + params["conv_b"][None, :, None, None], 0.0)
    feat = out.reshape(out.shape[0], -1)
    u = jnp.maximum(feat @ params["w1"].T + params["b1"], 0.0)
    v = jnp.maximum(u @ params["w2"].T + params["b2"], 0.0)
    z = v @ params["w3"].T + params["b3"]
    return z, u, v


if __name__ == "__main__":
    key = jax.random.PRNGKey(0)
    k_img, k_par = jax.random.split(key)

    batch, in_channels, spatial = 2, 3, 16
    mlp_sizes, num_classes = (64, 32), 10

    images = jax.random.normal(k_img, (batch, in_channels, spatial, spatial),
                               jnp.float32)
    params = make_params(k_par, in_channels=in_channels, conv_channels=8,
                         spatial=spatial, mlp_sizes=mlp_sizes,
                         num_classes=num_classes)

    z, (u, v) = init_encoder_mlp_forward(images, params)
    jax.block_until_ready((z, u, v))

    assert z.shape == (batch, num_classes)
    assert u.shape == (batch, mlp_sizes[0])
    assert v.shape == (batch, mlp_sizes[1])

    z_ref, u_ref, v_ref = reference_forward(images, params)
    # bf16 matmul inputs with f32 accumulation vs full-f32 reference.
    for got, ref in ((z, z_ref), (u, u_ref), (v, v_ref)):
        err = float(jnp.max(jnp.abs(got - ref)))
        assert err < 1e-1, f"max abs err too large: {err}"

    print("KERNEL_OK")
</pallas_src>

<mosaic_0001>
module attributes {stable_mosaic.version = 11 : i64} {
  func.func @_fused_forward_kernel(%arg0: i32, %arg1: memref<16x2048xbf16, #tpu.memory_space<vmem>>, %arg2: memref<512x128xbf16, #tpu.memory_space<vmem>>, %arg3: memref<1x512xf32, #tpu.memory_space<vmem>>, %arg4: memref<512x64xbf16, #tpu.memory_space<vmem>>, %arg5: memref<1x64xf32, #tpu.memory_space<vmem>>, %arg6: memref<64x32xbf16, #tpu.memory_space<vmem>>, %arg7: memref<1x32xf32, #tpu.memory_space<vmem>>, %arg8: memref<32x32xbf16, #tpu.memory_space<vmem>>, %arg9: memref<1x32xf32, #tpu.memory_space<vmem>>, %arg10: memref<16x128xf32, #tpu.memory_space<vmem>>) attributes {dimension_semantics = [#tpu.dimension_semantics<parallel>], iteration_bounds = array<i64: 1>, scalar_prefetch = 0 : i64, scratch_operands = 0 : i64, tpu.core_type = #tpu.core_type<tc>, window_params = [{transform_indices = @transform_0, window_bounds = array<i64: 16, 2048>}, {pipeline_mode = #tpu.pipeline_mode<synchronous>, transform_indices = @transform_1, window_bounds = array<i64: 512, 128>}, {pipeline_mode = #tpu.pipeline_mode<synchronous>, transform_indices = @transform_2, window_bounds = array<i64: 1, 512>}, {pipeline_mode = #tpu.pipeline_mode<synchronous>, transform_indices = @transform_3, window_bounds = array<i64: 512, 64>}, {pipeline_mode = #tpu.pipeline_mode<synchronous>, transform_indices = @transform_4, window_bounds = array<i64: 1, 64>}, {pipeline_mode = #tpu.pipeline_mode<synchronous>, transform_indices = @transform_5, window_bounds = array<i64: 64, 32>}, {pipeline_mode = #tpu.pipeline_mode<synchronous>, transform_indices = @transform_6, window_bounds = array<i64: 1, 32>}, {pipeline_mode = #tpu.pipeline_mode<synchronous>, transform_indices = @transform_7, window_bounds = array<i64: 32, 32>}, {pipeline_mode = #tpu.pipeline_mode<synchronous>, transform_indices = @transform_8, window_bounds = array<i64: 1, 32>}, {transform_indices = @transform_9, window_bounds = array<i64: 16, 128>}]} {
    %c0 = arith.constant 0 : index
    %c0_0 = arith.constant 0 : index
    %0 = vector.load %arg1[%c0, %c0_0] : memref<16x2048xbf16, #tpu.memory_space<vmem>>, vector<16x2048xbf16>
    %c0_1 = arith.constant 0 : index
    %c0_2 = arith.constant 0 : index
    %1 = vector.load %arg2[%c0_1, %c0_2] : memref<512x128xbf16, #tpu.memory_space<vmem>>, vector<512x128xbf16>
    %2 = vector.extract_strided_slice %0 {offsets = [0, 0], sizes = [16, 512], strides = [1, 1]} : vector<16x2048xbf16> to vector<16x512xbf16>
    %cst = arith.constant dense<0.000000e+00> : vector<16x128xf32>
    %3 = tpu.matmul %2, %1, %cst {dimension_numbers = #tpu.dot_dimension_numbers<[1], [0], [0], [1], [0, 0, 1, 1], [], []>} : vector<16x512xbf16>, vector<512x128xbf16>, vector<16x128xf32> -> vector<16x128xf32>
    %4 = vector.extract_strided_slice %0 {offsets = [0, 512], sizes = [16, 512], strides = [1, 1]} : vector<16x2048xbf16> to vector<16x512xbf16>
    %cst_3 = arith.constant dense<0.000000e+00> : vector<16x128xf32>
    %5 = tpu.matmul %4, %1, %cst_3 {dimension_numbers = #tpu.dot_dimension_numbers<[1], [0], [0], [1], [0, 0, 1, 1], [], []>} : vector<16x512xbf16>, vector<512x128xbf16>, vector<16x128xf32> -> vector<16x128xf32>
    %6 = vector.extract_strided_slice %0 {offsets = [0, 1024], sizes = [16, 512], strides = [1, 1]} : vector<16x2048xbf16> to vector<16x512xbf16>
    %cst_4 = arith.constant dense<0.000000e+00> : vector<16x128xf32>
    %7 = tpu.matmul %6, %1, %cst_4 {dimension_numbers = #tpu.dot_dimension_numbers<[1], [0], [0], [1], [0, 0, 1, 1], [], []>} : vector<16x512xbf16>, vector<512x128xbf16>, vector<16x128xf32> -> vector<16x128xf32>
    %8 = vector.extract_strided_slice %0 {offsets = [0, 1536], sizes = [16, 512], strides = [1, 1]} : vector<16x2048xbf16> to vector<16x512xbf16>
    %cst_5 = arith.constant dense<0.000000e+00> : vector<16x128xf32>
    %9 = tpu.matmul %8, %1, %cst_5 {dimension_numbers = #tpu.dot_dimension_numbers<[1], [0], [0], [1], [0, 0, 1, 1], [], []>} : vector<16x512xbf16>, vector<512x128xbf16>, vector<16x128xf32> -> vector<16x128xf32>
    %10 = tpu.concatenate %3, %5, %7, %9 in 1 : vector<16x128xf32>, vector<16x128xf32>, vector<16x128xf32>, vector<16x128xf32> -> vector<16x512xf32>
    %c0_6 = arith.constant 0 : index
    %c0_7 = arith.constant 0 : index
    %11 = vector.load %arg3[%c0_6, %c0_7] : memref<1x512xf32, #tpu.memory_space<vmem>>, vector<1x512xf32>
    %12 = vector.broadcast %11 : vector<1x512xf32> to vector<16x512xf32>
    %13 = arith.addf %10, %12 : vector<16x512xf32>
    %cst_8 = arith.constant 0.000000e+00 : f32
    %14 = vector.broadcast %cst_8 : f32 to vector<16x512xf32>
    %15 = arith.maximumf %13, %14 : vector<16x512xf32>
    %16 = arith.truncf %15 : vector<16x512xf32> to vector<16x512xbf16>
    %c0_9 = arith.constant 0 : index
    %c0_10 = arith.constant 0 : index
    %17 = vector.load %arg4[%c0_9, %c0_10] : memref<512x64xbf16, #tpu.memory_space<vmem>>, vector<512x64xbf16>
    %cst_11 = arith.constant dense<0.000000e+00> : vector<16x64xf32>
    %18 = tpu.matmul %16, %17, %cst_11 {dimension_numbers = #tpu.dot_dimension_numbers<[1], [0], [0], [1], [0, 0, 1, 1], [], []>} : vector<16x512xbf16>, vector<512x64xbf16>, vector<16x64xf32> -> vector<16x64xf32>
    %c0_12 = arith.constant 0 : index
    %c0_13 = arith.constant 0 : index
    %19 = vector.load %arg5[%c0_12, %c0_13] : memref<1x64xf32, #tpu.memory_space<vmem>>, vector<1x64xf32>
    %20 = vector.broadcast %19 : vector<1x64xf32> to vector<16x64xf32>
    %21 = arith.addf %18, %20 : vector<16x64xf32>
    %cst_14 = arith.constant 0.000000e+00 : f32
    %22 = vector.broadcast %cst_14 : f32 to vector<16x64xf32>
    %23 = arith.maximumf %21, %22 : vector<16x64xf32>
    %24 = arith.truncf %23 : vector<16x64xf32> to vector<16x64xbf16>
    %c0_15 = arith.constant 0 : index
    %c0_16 = arith.constant 0 : index
    %25 = vector.load %arg6[%c0_15, %c0_16] : memref<64x32xbf16, #tpu.memory_space<vmem>>, vector<64x32xbf16>
    %cst_17 = arith.constant dense<0.000000e+00> : vector<16x32xf32>
    %26 = tpu.matmul %24, %25, %cst_17 {dimension_numbers = #tpu.dot_dimension_numbers<[1], [0], [0], [1], [0, 0, 1, 1], [], []>} : vector<16x64xbf16>, vector<64x32xbf16>, vector<16x32xf32> -> vector<16x32xf32>
    %c0_18 = arith.constant 0 : index
    %c0_19 = arith.constant 0 : index
    %27 = vector.load %arg7[%c0_18, %c0_19] : memref<1x32xf32, #tpu.memory_space<vmem>>, vector<1x32xf32>
    %28 = vector.broadcast %27 : vector<1x32xf32> to vector<16x32xf32>
    %29 = arith.addf %26, %28 : vector<16x32xf32>
    %cst_20 = arith.constant 0.000000e+00 : f32
    %30 = vector.broadcast %cst_20 : f32 to vector<16x32xf32>
    %31 = arith.maximumf %29, %30 : vector<16x32xf32>
    %32 = arith.truncf %31 : vector<16x32xf32> to vector<16x32xbf16>
    %c0_21 = arith.constant 0 : index
    %c0_22 = arith.constant 0 : index
    %33 = vector.load %arg8[%c0_21, %c0_22] : memref<32x32xbf16, #tpu.memory_space<vmem>>, vector<32x32xbf16>
    %cst_23 = arith.constant dense<0.000000e+00> : vector<16x32xf32>
    %34 = tpu.matmul %32, %33, %cst_23 {dimension_numbers = #tpu.dot_dimension_numbers<[1], [0], [0], [1], [0, 0, 1, 1], [], []>} : vector<16x32xbf16>, vector<32x32xbf16>, vector<16x32xf32> -> vector<16x32xf32>
    %c0_24 = arith.constant 0 : index
    %c0_25 = arith.constant 0 : index
    %35 = vector.load %arg9[%c0_24, %c0_25] : memref<1x32xf32, #tpu.memory_space<vmem>>, vector<1x32xf32>
    %36 = vector.broadcast %35 : vector<1x32xf32> to vector<16x32xf32>
    %37 = arith.addf %34, %36 : vector<16x32xf32>
    %38 = tpu.concatenate %23, %31, %37 in 1 : vector<16x64xf32>, vector<16x32xf32>, vector<16x32xf32> -> vector<16x128xf32>
    %c0_26 = arith.constant 0 : index
    %c0_27 = arith.constant 0 : index
    %39 = vector.load %arg10[%c0_26, %c0_27] : memref<16x128xf32, #tpu.memory_space<vmem>>, vector<16x128xf32>
    tpu.vector_store %arg10[%c0_26, %c0_27], %38 {strides = array<i32>} : memref<16x128xf32, #tpu.memory_space<vmem>>, vector<16x128xf32>,
    return
  }
  func.func @transform_0(%arg0: i32) -> (i32, i32) {
    %c0_i32 = arith.constant 0 : i32
    %c0_i32_0 = arith.constant 0 : i32
    return %arg0, %c0_i32 : i32, i32
  }
  func.func @transform_1(%arg0: i32) -> (i32, i32) {
    %c0_i32 = arith.constant 0 : i32
    %c0_i32_0 = arith.constant 0 : i32
    %c0_i32_1 = arith.constant 0 : i32
    return %c0_i32, %c0_i32_0 : i32, i32
  }
  func.func @transform_2(%arg0: i32) -> (i32, i32) {
    %c0_i32 = arith.constant 0 : i32
    %c0_i32_0 = arith.constant 0 : i32
    %c0_i32_1 = arith.constant 0 : i32
    return %c0_i32, %c0_i32_0 : i32, i32
  }
  func.func @transform_3(%arg0: i32) -> (i32, i32) {
    %c0_i32 = arith.constant 0 : i32
    %c0_i32_0 = arith.constant 0 : i32
    %c0_i32_1 = arith.constant 0 : i32
    return %c0_i32, %c0_i32_0 : i32, i32
  }
  func.func @transform_4(%arg0: i32) -> (i32, i32) {
    %c0_i32 = arith.constant 0 : i32
    %c0_i32_0 = arith.constant 0 : i32
    %c0_i32_1 = arith.constant 0 : i32
    return %c0_i32, %c0_i32_0 : i32, i32
  }
  func.func @transform_5(%arg0: i32) -> (i32, i32) {
    %c0_i32 = arith.constant 0 : i32
    %c0_i32_0 = arith.constant 0 : i32
    %c0_i32_1 = arith.constant 0 : i32
    return %c0_i32, %c0_i32_0 : i32, i32
  }
  func.func @transform_6(%arg0: i32) -> (i32, i32) {
    %c0_i32 = arith.constant 0 : i32
    %c0_i32_0 = arith.constant 0 : i32
    %c0_i32_1 = arith.constant 0 : i32
    return %c0_i32, %c0_i32_0 : i32, i32
  }
  func.func @transform_7(%arg0: i32) -> (i32, i32) {
    %c0_i32 = arith.constant 0 : i32
    %c0_i32_0 = arith.constant 0 : i32
    %c0_i32_1 = arith.constant 0 : i32
    return %c0_i32, %c0_i32_0 : i32, i32
  }
  func.func @transform_8(%arg0: i32) -> (i32, i32) {
    %c0_i32 = arith.constant 0 : i32
    %c0_i32_0 = arith.constant 0 : i32
    %c0_i32_1 = arith.constant 0 : i32
    return %c0_i32, %c0_i32_0 : i32, i32
  }
  func.func @transform_9(%arg0: i32) -> (i32, i32) {
    %c0_i32 = arith.constant 0 : i32
    %c0_i32_0 = arith.constant 0 : i32
    return %arg0, %c0_i32 : i32, i32
  }
}

</mosaic_0001>

<llo_original>
// kernel: tile.8
$region0: #{tile.8}
  #allocation0 [shape = 's32[1]{0}', space=sflag, size = 0x4, scoped, tag = 'scoped memory for tile.8']
  %s0 = inlined_call_operand.vmem [shape: f32[8], index: 0, kind: input, shape index: {}]
  %s1 = inlined_call_operand.vmem [shape: f32[64,8], index: 1, kind: output, shape index: {}]
  // Predicated region
  $region2: #{tile.8} parent=0 // pred_check
    _
  $region3: #{tile.8} parent=0 // pred_check_branch
    %3 = sbr.rel (0) target = $region5
  $region4: #{tile.8} parent=0 // pred_region
    _
  $region5: #{tile.8} parent=0 // pred_fallthru
    _
  %v4 = vld [vmem:[%s0] ss:$0 sm:$0xff]
  %5 = vst [vmem:[%s1] sm:$0xff] %v4
  %s6 = scalar_lea.vmem %s1, 8
  %7 = vst [vmem:[%s6] sm:$0xff] %v4
  %s8 = scalar_lea.vmem %s1, 16
  %9 = vst [vmem:[%s8] sm:$0xff] %v4
  %s10 = scalar_lea.vmem %s1, 24
  %11 = vst [vmem:[%s10] sm:$0xff] %v4
  %s12 = scalar_lea.vmem %s1, 32
  %13 = vst [vmem:[%s12] sm:$0xff] %v4
  %s14 = scalar_lea.vmem %s1, 40
  %15 = vst [vmem:[%s14] sm:$0xff] %v4
  %s16 = scalar_lea.vmem %s1, 48
  %17 = vst [vmem:[%s16] sm:$0xff] %v4
  %s18 = scalar_lea.vmem %s1, 56
  %19 = vst [vmem:[%s18] sm:$0xff] %v4

// kernel: tile.9
$region0: #{tile.9}
  %s0 = inlined_call_operand.vmem [shape: f32[64,8], index: 0, kind: input, shape index: {}]
  %s1 = inlined_call_operand.vmem [shape: f32[1,512], index: 1, kind: output, shape index: {}]
  $region1: #{tile.9} parent=0
    #allocation0 [shape = 'u8[16384]{0}', space=vmem, size = 0x4000, scoped, tag = 'scoped mem for output reshape']
    %s2 = smov 3
    %v3 = vld [vmem:[%s0] ss:$16 sm:%s2]
    %s4 = smov 12
    %v5 = vld [vmem:[%s0] ss:$16 sm:%s4]
    %vm6 = vcmask 1043458
    %v7 = vsel %vm6, %v5, %v3
    %vm8 = vcmask 64512
    %9 = vst.msk [vmem:[#allocation0] ss:$8 sm:$0xf] %vm8, %v7
    %s10 = scalar_lea.vmem %s0, 15
    %s11 = smov 3
    %v12 = vld [vmem:[%s10] ss:$16 sm:%s11]
    %s13 = scalar_lea.vmem %s0, 15
    %s14 = smov 12
    %v15 = vld [vmem:[%s13] ss:$16 sm:%s14]
    %vm16 = vcmask 1043458
    %v17 = vsel %vm16, %v15, %v12
    %18 = vrot.lane.b32.xlu0 %v17, 120
    %v19 = vpop.permute.xlu0 %18
    %vm20 = vcmask 1048512
    %21 = vst.msk [vmem:[#allocation0] ss:$8 sm:$0xf] %vm20, %v19
    %s22 = scalar_lea.vmem %s0, 14
    %s23 = smov 3
    %v24 = vld [vmem:[%s22] ss:$16 sm:%s23]
    %s25 = scalar_lea.vmem %s0, 14
    %s26 = smov 12
    %v27 = vld [vmem:[%s25] ss:$16 sm:%s26]
    %vm28 = vcmask 1043458
    %v29 = vsel %vm28, %v27, %v24
    %30 = vrot.lane.b32.xlu0 %v29, 112
    %v31 = vpop.permute.xlu0 %30
    %vm32 = vcmask 982912
    %33 = vst.msk [vmem:[#allocation0] ss:$8 sm:$0xf] %vm32, %v31
    %s34 = scalar_lea.vmem %s0, 13
    %s35 = smov 3
    %v36 = vld [vmem:[%s34] ss:$16 sm:%s35]
    %s37 = scalar_lea.vmem %s0, 13
    %s38 = smov 12
    %v39 = vld [vmem:[%s37] ss:$16 sm:%s38]
    %vm40 = vcmask 1043458
    %v41 = vsel %vm40, %v39, %v36
    %42 = vrot.lane.b32.xlu0 %v41, 104
    %v43 = vpop.permute.xlu0 %42
    %vm44 = vcmask 917312
    %45 = vst.msk [vmem:[#allocation0] ss:$8 sm:$0xf] %vm44, %v43
    %s46 = scalar_lea.vmem %s0, 12
    %s47 = smov 3
    %v48 = vld [vmem:[%s46] ss:$16 sm:%s47]
    %s49 = scalar_lea.vmem %s0, 12
    %s50 = smov 12
    %v51 = vld [vmem:[%s49] ss:$16 sm:%s50]
    %vm52 = vcmask 1043458
    %v53 = vsel %vm52, %v51, %v48
    %54 = vrot.lane.b32.xlu0 %v53, 96
    %v55 = vpop.permute.xlu0 %54
    %vm56 = vcmask 851712
    %57 = vst.msk [vmem:[#allocation0] ss:$8 sm:$0xf] %vm56, %v55
    %s58 = scalar_lea.vmem %s0, 11
    %s59 = smov 3
    %v60 = vld [vmem:[%s58] ss:$16 sm:%s59]
    %s61 = scalar_lea.vmem %s0, 11
    %s62 = smov 12
    %v63 = vld [vmem:[%s61] ss:$16 sm:%s62]
    %vm64 = vcmask 1043458
    %v65 = vsel %vm64, %v63, %v60
    %66 = vrot.lane.b32.xlu0 %v65, 88
    %v67 = vpop.permute.xlu0 %66
    %vm68 = vcmask 786112
    %69 = vst.msk [vmem:[#allocation0] ss:$8 sm:$0xf] %vm68, %v67
    %s70 = scalar_lea.vmem %s0, 10
    %s71 = smov 3
    %v72 = vld [vmem:[%s70] ss:$16 sm:%s71]
    %s73 = scalar_lea.vmem %s0, 10
    %s74 = smov 12
    %v75 = vld [vmem:[%s73] ss:$16 sm:%s74]
    %vm76 = vcmask 1043458
    %v77 = vsel %vm76, %v75, %v72
    %78 = vrot.lane.b32.xlu0 %v77, 80
    %v79 = vpop.permute.xlu0 %78
    %vm80 = vcmask 720512
    %81 = vst.msk [vmem:[#allocation0] ss:$8 sm:$0xf] %vm80, %v79
    %s82 = scalar_lea.vmem %s0, 9
    %s83 = smov 3
    %v84 = vld [vmem:[%s82] ss:$16 sm:%s83]
    %s85 = scalar_lea.vmem %s0, 9
    %s86 = smov 12
    %v87 = vld [vmem:[%s85] ss:$16 sm:%s86]
    %vm88 = vcmask 1043458
    %v89 = vsel %vm88, %v87, %v84
    %90 = vrot.lane.b32.xlu0 %v89, 72
    %v91 = vpop.permute.xlu0 %90
    %vm92 = vcmask 654912
    %93 = vst.msk [vmem:[#allocation0] ss:$8 sm:$0xf] %vm92, %v91
    %s94 = scalar_lea.vmem %s0, 8
    %s95 = smov 3
    %v96 = vld [vmem:[%s94] ss:$16 sm:%s95]
    %s97 = scalar_lea.vmem %s0, 8
    %s98 = smov 12
    %v99 = vld [vmem:[%s97] ss:$16 sm:%s98]
    %vm100 = vcmask 1043458
    %v101 = vsel %vm100, %v99, %v96
    %102 = vrot.lane.b32.xlu0 %v101, 64
    %v103 = vpop.permute.xlu0 %102
    %vm104 = vcmask 589312
    %105 = vst.msk [vmem:[#allocation0] ss:$8 sm:$0xf] %vm104, %v103
    %s106 = scalar_lea.vmem %s0, 7
    %s107 = smov 3
    %v108 = vld [vmem:[%s106] ss:$16 sm:%s107]
    %s109 = scalar_lea.vmem %s0, 7
    %s110 = smov 12
    %v111 = vld [vmem:[%s109] ss:$16 sm:%s110]
    %vm112 = vcmask 1043458
    %v113 = vsel %vm112, %v111, %v108
    %114 = vrot.lane.b32.xlu0 %v113, 56
    %v115 = vpop.permute.xlu0 %114
    %vm116 = vcmask 523712
    %117 = vst.msk [vmem:[#allocation0] ss:$8 sm:$0xf] %vm116, %v115
    %s118 = scalar_lea.vmem %s0, 6
    %s119 = smov 3
    %v120 = vld [vmem:[%s118] ss:$16 sm:%s119]
    %s121 = scalar_lea.vmem %s0, 6
    %s122 = smov 12
    %v123 = vld [vmem:[%s121] ss:$16 sm:%s122]
    %vm124 = vcmask 1043458
    %v125 = vsel %vm124, %v123, %v120
    %126 = vrot.lane.b32.xlu0 %v125, 48
    %v127 = vpop.permute.xlu0 %126
    %vm128 = vcmask 458112
    %129 = vst.msk [vmem:[#allocation0] ss:$8 sm:$0xf] %vm128, %v127
    %s130 = scalar_lea.vmem %s0, 5
    %s131 = smov 3
    %v132 = vld [vmem:[%s130] ss:$16 sm:%s131]
    %s133 = scalar_lea.vmem %s0, 5
    %s134 = smov 12
    %v135 = vld [vmem:[%s133] ss:$16 sm:%s134]
    %vm136 = vcmask 1043458
    %v137 = vsel %vm136, %v135, %v132
    %138 = vrot.lane.b32.xlu0 %v137, 40
    %v139 = vpop.permute.xlu0 %138
    %vm140 = vcmask 392512
    %141 = vst.msk [vmem:[#allocation0] ss:$8 sm:$0xf] %vm140, %v139
    %s142 = scalar_lea.vmem %s0, 4
    %s143 = smov 3
    %v144 = vld [vmem:[%s142] ss:$16 sm:%s143]
    %s145 = scalar_lea.vmem %s0, 4
    %s146 = smov 12
    %v147 = vld [vmem:[%s145] ss:$16 sm:%s146]
    %vm148 = vcmask 1043458
    %v149 = vsel %vm148, %v147, %v144
    %150 = vrot.lane.b32.xlu0 %v149, 32
    %v151 = vpop.permute.xlu0 %150
    %vm152 = vcmask 326912
    %153 = vst.msk [vmem:[#allocation0] ss:$8 sm:$0xf] %vm152, %v151
    %s154 = scalar_lea.vmem %s0, 3
    %s155 = smov 3
    %v156 = vld [vmem:[%s154] ss:$16 sm:%s155]
    %s157 = scalar_lea.vmem %s0, 3
    %s158 = smov 12
    %v159 = vld [vmem:[%s157] ss:$16 sm:%s158]
    %vm160 = vcmask 1043458
    %v161 = vsel %vm160, %v159, %v156
    %162 = vrot.lane.b32.xlu0 %v161, 24
    %v163 = vpop.permute.xlu0 %162
    %vm164 = vcmask 261312
    %165 = vst.msk [vmem:[#allocation0] ss:$8 sm:$0xf] %vm164, %v163
    %s166 = scalar_lea.vmem %s0, 2
    %s167 = smov 3
    %v168 = vld [vmem:[%s166] ss:$16 sm:%s167]
    %s169 = scalar_lea.vmem %s0, 2
    %s170 = smov 12
    %v171 = vld [vmem:[%s169] ss:$16 sm:%s170]
    %vm172 = vcmask 1043458
    %v173 = vsel %vm172, %v171, %v168
    %174 = vrot.lane.b32.xlu0 %v173, 16
    %v175 = vpop.permute.xlu0 %174
    %vm176 = vcmask 195712
    %177 = vst.msk [vmem:[#allocation0] ss:$8 sm:$0xf] %vm176, %v175
    %s178 = scalar_lea.vmem %s0, 1
    %s179 = smov 3
    %v180 = vld [vmem:[%s178] ss:$16 sm:%s179]
    %s181 = scalar_lea.vmem %s0, 1
    %s182 = smov 12
    %v183 = vld [vmem:[%s181] ss:$16 sm:%s182]
    %vm184 = vcmask 1043458
    %v185 = vsel %vm184, %v183, %v180
    %186 = vrot.lane.b32.xlu0 %v185, 8
    %v187 = vpop.permute.xlu0 %186
    %vm188 = vcmask 130112
    %189 = vst.msk [vmem:[#allocation0] ss:$8 sm:$0xf] %vm188, %v187
    %s191 = ssub.s32 2, 1
    %v192 = vld [vmem:[#allocation0] sm:%s191]
    %s194 = ssub.s32 2, 1
    %195 = vst [vmem:[%s1] sm:%s194] %v192
    %s196 = scalar_lea.vmem [#allocation0], 8
    %v197 = vld [vmem:[%s196] sm:%s191]
    %s199 = ssub.s32 2, 1
    %s200 = scalar_lea.vmem %s1, 1
    %201 = vst [vmem:[%s200] sm:%s199] %v197
    %s202 = scalar_lea.vmem [#allocation0], 16
    %v203 = vld [vmem:[%s202] sm:%s191]
    %s205 = ssub.s32 2, 1
    %s206 = scalar_lea.vmem %s1, 2
    %207 = vst [vmem:[%s206] sm:%s205] %v203
    %s208 = scalar_lea.vmem [#allocation0], 24
    %v209 = vld [vmem:[%s208] sm:%s191]
    %s211 = ssub.s32 2, 1
    %s212 = scalar_lea.vmem %s1, 3
    %213 = vst [vmem:[%s212] sm:%s211] %v209

// kernel: init_encoder_mlp_forward.1
$region0: #{init_encoder_mlp_forward.1}
  #allocation0 [shape = 'u32[]', space=smem, size = 0x4, offset = 0x4, fixed_abs, tag = 'smem constant byte address 0x4 - core index']
  #allocation1 [shape = 'u32[72,128]{1,0:T(1,128)}', space=vmem, size = 0x9000, scoped, tag = 'internal scratch']
  %s0 = inlined_call_operand.vmem [shape: bf16[16,2048], index: 0, kind: input, shape index: {}]
  %s1 = inlined_call_operand.vmem [shape: bf16[512,128], index: 1, kind: input, shape index: {}]
  %s2 = inlined_call_operand.vmem [shape: f32[1,512], index: 2, kind: input, shape index: {}]
  %s3 = inlined_call_operand.vmem [shape: bf16[512,64], index: 3, kind: input, shape index: {}]
  %s4 = inlined_call_operand.vmem [shape: f32[1,64], index: 4, kind: input, shape index: {}]
  %s5 = inlined_call_operand.vmem [shape: bf16[64,32], index: 5, kind: input, shape index: {}]
  %s6 = inlined_call_operand.vmem [shape: f32[1,32], index: 6, kind: input, shape index: {}]
  %s7 = inlined_call_operand.vmem [shape: bf16[32,32], index: 7, kind: input, shape index: {}]
  %s8 = inlined_call_operand.vmem [shape: f32[1,32], index: 8, kind: input, shape index: {}]
  %s9 = inlined_call_operand.vmem [shape: f32[16,128], index: 9, kind: output, shape index: {}]
  %s10 = sld [smem:[#allocation0]]
  $region46: #{init_encoder_mlp_forward.1} parent=0
    _
  %s12 = ssub.s32 1, %s10
  %s13 = scalar_select 0, %s12, %s10
  // Predicated region
  $region2: #{init_encoder_mlp_forward.1} parent=0 // pred_check
    _
  $region3: #{init_encoder_mlp_forward.1} parent=0 // pred_check_branch
    %15 = sbr.rel (0) target = $region5
  $region4: #{init_encoder_mlp_forward.1} parent=0 // pred_region
    _
  $region5: #{init_encoder_mlp_forward.1} parent=0 // pred_fallthru
    _
  // Predicated region
  $region6: #{init_encoder_mlp_forward.1} parent=0 // pred_check
    _
  $region7: #{init_encoder_mlp_forward.1} parent=0 // pred_check_branch
    %17 = sbr.rel (0) target = $region9
  $region8: #{init_encoder_mlp_forward.1} parent=0 // pred_region
    _
  $region9: #{init_encoder_mlp_forward.1} parent=0 // pred_fallthru
    _
  // Predicated region
  $region10: #{init_encoder_mlp_forward.1} parent=0 // pred_check
    _
  $region11: #{init_encoder_mlp_forward.1} parent=0 // pred_check_branch
    %19 = sbr.rel (0) target = $region13
  $region12: #{init_encoder_mlp_forward.1} parent=0 // pred_region
    _
  $region13: #{init_encoder_mlp_forward.1} parent=0 // pred_fallthru
    _
  // Predicated region
  $region14: #{init_encoder_mlp_forward.1} parent=0 // pred_check
    _
  $region15: #{init_encoder_mlp_forward.1} parent=0 // pred_check_branch
    %21 = sbr.rel (0) target = $region17
  $region16: #{init_encoder_mlp_forward.1} parent=0 // pred_region
    _
  $region17: #{init_encoder_mlp_forward.1} parent=0 // pred_fallthru
    _
  // Predicated region
  $region18: #{init_encoder_mlp_forward.1} parent=0 // pred_check
    _
  $region19: #{init_encoder_mlp_forward.1} parent=0 // pred_check_branch
    %23 = sbr.rel (0) target = $region21
  $region20: #{init_encoder_mlp_forward.1} parent=0 // pred_region
    _
  $region21: #{init_encoder_mlp_forward.1} parent=0 // pred_fallthru
    _
  // Predicated region
  $region22: #{init_encoder_mlp_forward.1} parent=0 // pred_check
    _
  $region23: #{init_encoder_mlp_forward.1} parent=0 // pred_check_branch
    %25 = sbr.rel (0) target = $region25
  $region24: #{init_encoder_mlp_forward.1} parent=0 // pred_region
    _
  $region25: #{init_encoder_mlp_forward.1} parent=0 // pred_fallthru
    _
  // Predicated region
  $region26: #{init_encoder_mlp_forward.1} parent=0 // pred_check
    _
  $region27: #{init_encoder_mlp_forward.1} parent=0 // pred_check_branch
    %27 = sbr.rel (0) target = $region29
  $region28: #{init_encoder_mlp_forward.1} parent=0 // pred_region
    _
  $region29: #{init_encoder_mlp_forward.1} parent=0 // pred_fallthru
    _
  // Predicated region
  $region30: #{init_encoder_mlp_forward.1} parent=0 // pred_check
    _
  $region31: #{init_encoder_mlp_forward.1} parent=0 // pred_check_branch
    %29 = sbr.rel (0) target = $region33
  $region32: #{init_encoder_mlp_forward.1} parent=0 // pred_region
    _
  $region33: #{init_encoder_mlp_forward.1} parent=0 // pred_fallthru
    _
  // Predicated region
  $region34: #{init_encoder_mlp_forward.1} parent=0 // pred_check
    _
  $region35: #{init_encoder_mlp_forward.1} parent=0 // pred_check_branch
    %31 = sbr.rel (0) target = $region37
  $region36: #{init_encoder_mlp_forward.1} parent=0 // pred_region
    _
  $region37: #{init_encoder_mlp_forward.1} parent=0 // pred_fallthru
    _
  %v33 = vld [vmem:[%s0] sm:$0xff]
  %v34 = vld [vmem:[%s0 + $0x8] sm:$0xff]
  %v35 = vld [vmem:[%s0 + $0x10] sm:$0xff]
  %v36 = vld [vmem:[%s0 + $0x18] sm:$0xff]
  %v37 = vld [vmem:[%s0 + $0x20] sm:$0xff]
  %v38 = vld [vmem:[%s0 + $0x28] sm:$0xff]
  %v39 = vld [vmem:[%s0 + $0x30] sm:$0xff]
  %v40 = vld [vmem:[%s0 + $0x38] sm:$0xff]
  %v41 = vld [vmem:[%s0 + $0x40] sm:$0xff]
  %v42 = vld [vmem:[%s0 + $0x48] sm:$0xff]
  %v43 = vld [vmem:[%s0 + $0x50] sm:$0xff]
  %v44 = vld [vmem:[%s0 + $0x58] sm:$0xff]
  %v45 = vld [vmem:[%s0 + $0x60] sm:$0xff]
  %v46 = vld [vmem:[%s0 + $0x68] sm:$0xff]
  %v47 = vld [vmem:[%s0 + $0x70] sm:$0xff]
  %v48 = vld [vmem:[%s0 + $0x78] sm:$0xff]
  %v49 = vld [vmem:[%s1] sm:$0xf]
  %v50 = vld [vmem:[%s1 + $0x4] sm:$0xf]
  %v51 = vld [vmem:[%s1 + $0x8] sm:$0xf]
  %v52 = vld [vmem:[%s1 + $0xc] sm:$0xf]
  %v53 = vld [vmem:[%s1 + $0x10] sm:$0xf]
  %v54 = vld [vmem:[%s1 + $0x14] sm:$0xf]
  %v55 = vld [vmem:[%s1 + $0x18] sm:$0xf]
  %v56 = vld [vmem:[%s1 + $0x1c] sm:$0xf]
  %v57 = vld [vmem:[%s1 + $0x20] sm:$0xf]
  %v58 = vld [vmem:[%s1 + $0x24] sm:$0xf]
  %v59 = vld [vmem:[%s1 + $0x28] sm:$0xf]
  %v60 = vld [vmem:[%s1 + $0x2c] sm:$0xf]
  %v61 = vld [vmem:[%s1 + $0x30] sm:$0xf]
  %v62 = vld [vmem:[%s1 + $0x34] sm:$0xf]
  %v63 = vld [vmem:[%s1 + $0x38] sm:$0xf]
  %v64 = vld [vmem:[%s1 + $0x3c] sm:$0xf]
  %v65 = vld [vmem:[%s1 + $0x40] sm:$0xf]
  %v66 = vld [vmem:[%s1 + $0x44] sm:$0xf]
  %v67 = vld [vmem:[%s1 + $0x48] sm:$0xf]
  %v68 = vld [vmem:[%s1 + $0x4c] sm:$0xf]
  %v69 = vld [vmem:[%s1 + $0x50] sm:$0xf]
  %v70 = vld [vmem:[%s1 + $0x54] sm:$0xf]
  %v71 = vld [vmem:[%s1 + $0x58] sm:$0xf]
  %v72 = vld [vmem:[%s1 + $0x5c] sm:$0xf]
  %v73 = vld [vmem:[%s1 + $0x60] sm:$0xf]
  %v74 = vld [vmem:[%s1 + $0x64] sm:$0xf]
  %v75 = vld [vmem:[%s1 + $0x68] sm:$0xf]
  %v76 = vld [vmem:[%s1 + $0x6c] sm:$0xf]
  %v77 = vld [vmem:[%s1 + $0x70] sm:$0xf]
  %v78 = vld [vmem:[%s1 + $0x74] sm:$0xf]
  %v79 = vld [vmem:[%s1 + $0x78] sm:$0xf]
  %v80 = vld [vmem:[%s1 + $0x7c] sm:$0xf]
  %v81 = vld [vmem:[%s1 + $0x80] sm:$0xf]
  %v82 = vld [vmem:[%s1 + $0x84] sm:$0xf]
  %v83 = vld [vmem:[%s1 + $0x88] sm:$0xf]
  %v84 = vld [vmem:[%s1 + $0x8c] sm:$0xf]
  %v85 = vld [vmem:[%s1 + $0x90] sm:$0xf]
  %v86 = vld [vmem:[%s1 + $0x94] sm:$0xf]
  %v87 = vld [vmem:[%s1 + $0x98] sm:$0xf]
  %v88 = vld [vmem:[%s1 + $0x9c] sm:$0xf]
  %v89 = vld [vmem:[%s1 + $0xa0] sm:$0xf]
  %v90 = vld [vmem:[%s1 + $0xa4] sm:$0xf]
  %v91 = vld [vmem:[%s1 + $0xa8] sm:$0xf]
  %v92 = vld [vmem:[%s1 + $0xac] sm:$0xf]
  %v93 = vld [vmem:[%s1 + $0xb0] sm:$0xf]
  %v94 = vld [vmem:[%s1 + $0xb4] sm:$0xf]
  %v95 = vld [vmem:[%s1 + $0xb8] sm:$0xf]
  %v96 = vld [vmem:[%s1 + $0xbc] sm:$0xf]
  %v97 = vld [vmem:[%s1 + $0xc0] sm:$0xf]
  %v98 = vld [vmem:[%s1 + $0xc4] sm:$0xf]
  %v99 = vld [vmem:[%s1 + $0xc8] sm:$0xf]
  %v100 = vld [vmem:[%s1 + $0xcc] sm:$0xf]
  %v101 = vld [vmem:[%s1 + $0xd0] sm:$0xf]
  %v102 = vld [vmem:[%s1 + $0xd4] sm:$0xf]
  %v103 = vld [vmem:[%s1 + $0xd8] sm:$0xf]
  %v104 = vld [vmem:[%s1 + $0xdc] sm:$0xf]
  %v105 = vld [vmem:[%s1 + $0xe0] sm:$0xf]
  %v106 = vld [vmem:[%s1 + $0xe4] sm:$0xf]
  %v107 = vld [vmem:[%s1 + $0xe8] sm:$0xf]
  %v108 = vld [vmem:[%s1 + $0xec] sm:$0xf]
  %v109 = vld [vmem:[%s1 + $0xf0] sm:$0xf]
  %v110 = vld [vmem:[%s1 + $0xf4] sm:$0xf]
  %v111 = vld [vmem:[%s1 + $0xf8] sm:$0xf]
  %v112 = vld [vmem:[%s1 + $0xfc] sm:$0xf]
  %v117 = vunpack.c.l.b16 %v33
  %v118 = vunpack.c.h.b16 %v33
  %v119 = vunpack.c.l.b16 %v34
  %v120 = vunpack.c.h.b16 %v34
  %v121 = vunpack.c.l.b16 %v41
  %v122 = vunpack.c.h.b16 %v41
  %v123 = vunpack.c.l.b16 %v42
  %v124 = vunpack.c.h.b16 %v42
  %v125 = vpack.c.b16 %v121, %v117
  %v126 = vpack.c.b16 %v122, %v118
  %v127 = vpack.c.b16 %v123, %v119
  %v128 = vpack.c.b16 %v124, %v120
  %v197 = vunpack.c.l.b16 %v49
  %v198 = vunpack.c.l.b16 %v50
  %v199 = vunpack.c.l.b16 %v51
  %v200 = vunpack.c.l.b16 %v52
  %v201 = vunpack.c.l.b16 %v53
  %v202 = vunpack.c.l.b16 %v54
  %v203 = vunpack.c.l.b16 %v55
  %v204 = vunpack.c.l.b16 %v56
  %v205 = vunpack.c.l.b16 %v57
  %v206 = vunpack.c.l.b16 %v58
  %v207 = vunpack.c.l.b16 %v59
  %v208 = vunpack.c.l.b16 %v60
  %v209 = vunpack.c.l.b16 %v61
  %v210 = vunpack.c.l.b16 %v62
  %v211 = vunpack.c.l.b16 %v63
  %v212 = vunpack.c.l.b16 %v64
  %v213 = vunpack.c.l.b16 %v65
  %v214 = vunpack.c.l.b16 %v66
  %v215 = vunpack.c.l.b16 %v67
  %v216 = vunpack.c.l.b16 %v68
  %v217 = vunpack.c.l.b16 %v69
  %v218 = vunpack.c.l.b16 %v70
  %v219 = vunpack.c.l.b16 %v71
  %v220 = vunpack.c.l.b16 %v72
  %v221 = vunpack.c.l.b16 %v73
  %v222 = vunpack.c.l.b16 %v74
  %v223 = vunpack.c.l.b16 %v75
  %v224 = vunpack.c.l.b16 %v76
  %v225 = vunpack.c.l.b16 %v77
  %v226 = vunpack.c.l.b16 %v78
  %v227 = vunpack.c.l.b16 %v79
  %v228 = vunpack.c.l.b16 %v80
  %v229 = vunpack.c.l.b16 %v81
  %v230 = vunpack.c.l.b16 %v82
  %v231 = vunpack.c.l.b16 %v83
  %v232 = vunpack.c.l.b16 %v84
  %v233 = vunpack.c.l.b16 %v85
  %v234 = vunpack.c.l.b16 %v86
  %v235 = vunpack.c.l.b16 %v87
  %v236 = vunpack.c.l.b16 %v88
  %v237 = vunpack.c.l.b16 %v89
  %v238 = vunpack.c.l.b16 %v90
  %v239 = vunpack.c.l.b16 %v91
  %v240 = vunpack.c.l.b16 %v92
  %v241 = vunpack.c.l.b16 %v93
  %v242 = vunpack.c.l.b16 %v94
  %v243 = vunpack.c.l.b16 %v95
  %v244 = vunpack.c.l.b16 %v96
  %v245 = vunpack.c.l.b16 %v97
  %v246 = vunpack.c.l.b16 %v98
  %v247 = vunpack.c.l.b16 %v99
  %v248 = vunpack.c.l.b16 %v100
  %v249 = vunpack.c.l.b16 %v101
  %v250 = vunpack.c.l.b16 %v102
  %v251 = vunpack.c.l.b16 %v103
  %v252 = vunpack.c.l.b16 %v104
  %v253 = vunpack.c.l.b16 %v105
  %v254 = vunpack.c.l.b16 %v106
  %v255 = vunpack.c.l.b16 %v107
  %v256 = vunpack.c.l.b16 %v108
  %v257 = vunpack.c.l.b16 %v109
  %v258 = vunpack.c.l.b16 %v110
  %v259 = vunpack.c.l.b16 %v111
  %v260 = vunpack.c.l.b16 %v112
  %v261 = vpack.c.b16 %v198, %v197
  %v262 = vpack.c.b16 %v200, %v199
  %v263 = vpack.c.b16 %v202, %v201
  %v264 = vpack.c.b16 %v204, %v203
  %v265 = vpack.c.b16 %v206, %v205
  %v266 = vpack.c.b16 %v208, %v207
  %v267 = vpack.c.b16 %v210, %v209
  %v268 = vpack.c.b16 %v212, %v211
  %v269 = vpack.c.b16 %v214, %v213
  %v270 = vpack.c.b16 %v216, %v215
  %v271 = vpack.c.b16 %v218, %v217
  %v272 = vpack.c.b16 %v220, %v219
  %v273 = vpack.c.b16 %v222, %v221
  %v274 = vpack.c.b16 %v224, %v223
  %v275 = vpack.c.b16 %v226, %v225
  %v276 = vpack.c.b16 %v228, %v227
  %v277 = vpack.c.b16 %v230, %v229
  %v278 = vpack.c.b16 %v232, %v231
  %v279 = vpack.c.b16 %v234, %v233
  %v280 = vpack.c.b16 %v236, %v235
  %v281 = vpack.c.b16 %v238, %v237
  %v282 = vpack.c.b16 %v240, %v239
  %v283 = vpack.c.b16 %v242, %v241
  %v284 = vpack.c.b16 %v244, %v243
  %v285 = vpack.c.b16 %v246, %v245
  %v286 = vpack.c.b16 %v248, %v247
  %v287 = vpack.c.b16 %v250, %v249
  %v288 = vpack.c.b16 %v252, %v251
  %v289 = vpack.c.b16 %v254, %v253
  %v290 = vpack.c.b16 %v256, %v255
  %v291 = vpack.c.b16 %v258, %v257
  %v292 = vpack.c.b16 %v260, %v259
  %325 = vmatpush.bf16.msra.mxu0 %v268
  %326 = vmatpush.bf16.msra.mxu0 %v267
  %327 = vmatpush.bf16.msra.mxu0 %v266
  %328 = vmatpush.bf16.msra.mxu0 %v265
  %329 = vmatpush.bf16.msra.mxu0 %v264
  %330 = vmatpush.bf16.msra.mxu0 %v263
  %331 = vmatpush.bf16.msra.mxu0 %v262
  %332 = vmatpush.bf16.msra.mxu0 %v261
  %333 = vmatmul.bf16.gmra.mxu0 %v125
  %v334 = vpop.f32.mrf.mxu0
  %v335 = vadd.f32 0.0, %v334
  %v336 = vpop.f32.mrf.mxu0
  %v337 = vadd.f32 0.0, %v336
  %338 = vdwg.mxu0
  %339 = vmatpush.bf16.msra.mxu0 %v276
  %340 = vmatpush.bf16.msra.mxu0 %v275
  %341 = vmatpush.bf16.msra.mxu0 %v274
  %342 = vmatpush.bf16.msra.mxu0 %v273
  %343 = vmatpush.bf16.msra.mxu0 %v272
  %344 = vmatpush.bf16.msra.mxu0 %v271
  %345 = vmatpush.bf16.msra.mxu0 %v270
  %346 = vmatpush.bf16.msra.mxu0 %v269
  %347 = vmatmul.bf16.gmra.mxu0 %v126
  %v348 = vpop.f32.mrf.mxu0
  %v349 = vadd.f32 %v335, %v348
  %v350 = vpop.f32.mrf.mxu0
  %v351 = vadd.f32 %v337, %v350
  %352 = vdwg.mxu0
  %353 = vmatpush.bf16.msra.mxu0 %v284
  %354 = vmatpush.bf16.msra.mxu0 %v283
  %355 = vmatpush.bf16.msra.mxu0 %v282
  %356 = vmatpush.bf16.msra.mxu0 %v281
  %357 = vmatpush.bf16.msra.mxu0 %v280
  %358 = vmatpush.bf16.msra.mxu0 %v279
  %359 = vmatpush.bf16.msra.mxu0 %v278
  %360 = vmatpush.bf16.msra.mxu0 %v277
  %361 = vmatmul.bf16.gmra.mxu0 %v127
  %v362 = vpop.f32.mrf.mxu0
  %v363 = vadd.f32 %v349, %v362
  %v364 = vpop.f32.mrf.mxu0
  %v365 = vadd.f32 %v351, %v364
  %366 = vdwg.mxu0
  %367 = vmatpush.bf16.msra.mxu0 %v292
  %368 = vmatpush.bf16.msra.mxu0 %v291
  %369 = vmatpush.bf16.msra.mxu0 %v290
  %370 = vmatpush.bf16.msra.mxu0 %v289
  %371 = vmatpush.bf16.msra.mxu0 %v288
  %372 = vmatpush.bf16.msra.mxu0 %v287
  %373 = vmatpush.bf16.msra.mxu0 %v286
  %374 = vmatpush.bf16.msra.mxu0 %v285
  %375 = vmatmul.bf16.gmra.mxu0 %v128
  %v376 = vpop.f32.mrf.mxu0
  %v377 = vadd.f32 %v363, %v376
  %v378 = vpop.f32.mrf.mxu0
  %v379 = vadd.f32 %v365, %v378
  %380 = vdwg.mxu0
  %v385 = vunpack.c.l.b16 %v35
  %v386 = vunpack.c.h.b16 %v35
  %v387 = vunpack.c.l.b16 %v36
  %v388 = vunpack.c.h.b16 %v36
  %v389 = vunpack.c.l.b16 %v43
  %v390 = vunpack.c.h.b16 %v43
  %v391 = vunpack.c.l.b16 %v44
  %v392 = vunpack.c.h.b16 %v44
  %v393 = vpack.c.b16 %v389, %v385
  %v394 = vpack.c.b16 %v390, %v386
  %v395 = vpack.c.b16 %v391, %v387
  %v396 = vpack.c.b16 %v392, %v388
  %401 = vmatpush.bf16.msra.mxu0 %v268
  %402 = vmatpush.bf16.msra.mxu0 %v267
  %403 = vmatpush.bf16.msra.mxu0 %v266
  %404 = vmatpush.bf16.msra.mxu0 %v265
  %405 = vmatpush.bf16.msra.mxu0 %v264
  %406 = vmatpush.bf16.msra.mxu0 %v263
  %407 = vmatpush.bf16.msra.mxu0 %v262
  %408 = vmatpush.bf16.msra.mxu0 %v261
  %409 = vmatmul.bf16.gmra.mxu0 %v393
  %v410 = vpop.f32.mrf.mxu0
  %v411 = vadd.f32 0.0, %v410
  %v412 = vpop.f32.mrf.mxu0
  %v413 = vadd.f32 0.0, %v412
  %414 = vdwg.mxu0
  %415 = vmatpush.bf16.msra.mxu0 %v276
  %416 = vmatpush.bf16.msra.mxu0 %v275
  %417 = vmatpush.bf16.msra.mxu0 %v274
  %418 = vmatpush.bf16.msra.mxu0 %v273
  %419 = vmatpush.bf16.msra.mxu0 %v272
  %420 = vmatpush.bf16.msra.mxu0 %v271
  %421 = vmatpush.bf16.msra.mxu0 %v270
  %422 = vmatpush.bf16.msra.mxu0 %v269
  %423 = vmatmul.bf16.gmra.mxu0 %v394
  %v424 = vpop.f32.mrf.mxu0
  %v425 = vadd.f32 %v411, %v424
  %v426 = vpop.f32.mrf.mxu0
  %v427 = vadd.f32 %v413, %v426
  %428 = vdwg.mxu0
  %429 = vmatpush.bf16.msra.mxu0 %v284
  %430 = vmatpush.bf16.msra.mxu0 %v283
  %431 = vmatpush.bf16.msra.mxu0 %v282
  %432 = vmatpush.bf16.msra.mxu0 %v281
  %433 = vmatpush.bf16.msra.mxu0 %v280
  %434 = vmatpush.bf16.msra.mxu0 %v279
  %435 = vmatpush.bf16.msra.mxu0 %v278
  %436 = vmatpush.bf16.msra.mxu0 %v277
  %437 = vmatmul.bf16.gmra.mxu0 %v395
  %v438 = vpop.f32.mrf.mxu0
  %v439 = vadd.f32 %v425, %v438
  %v440 = vpop.f32.mrf.mxu0
  %v441 = vadd.f32 %v427, %v440
  %442 = vdwg.mxu0
  %443 = vmatpush.bf16.msra.mxu0 %v292
  %444 = vmatpush.bf16.msra.mxu0 %v291
  %445 = vmatpush.bf16.msra.mxu0 %v290
  %446 = vmatpush.bf16.msra.mxu0 %v289
  %447 = vmatpush.bf16.msra.mxu0 %v288
  %448 = vmatpush.bf16.msra.mxu0 %v287
  %449 = vmatpush.bf16.msra.mxu0 %v286
  %450 = vmatpush.bf16.msra.mxu0 %v285
  %451 = vmatmul.bf16.gmra.mxu0 %v396
  %v452 = vpop.f32.mrf.mxu0
  %v453 = vadd.f32 %v439, %v452
  %v454 = vpop.f32.mrf.mxu0
  %v455 = vadd.f32 %v441, %v454
  %456 = vdwg.mxu0
  %v461 = vunpack.c.l.b16 %v37
  %v462 = vunpack.c.h.b16 %v37
  %v463 = vunpack.c.l.b16 %v38
  %v464 = vunpack.c.h.b16 %v38
  %v465 = vunpack.c.l.b16 %v45
  %v466 = vunpack.c.h.b16 %v45
  %v467 = vunpack.c.l.b16 %v46
  %v468 = vunpack.c.h.b16 %v46
  %v469 = vpack.c.b16 %v465, %v461
  %v470 = vpack.c.b16 %v466, %v462
  %v471 = vpack.c.b16 %v467, %v463
  %v472 = vpack.c.b16 %v468, %v464
  %477 = vmatpush.bf16.msra.mxu0 %v268
  %478 = vmatpush.bf16.msra.mxu0 %v267
  %479 = vmatpush.bf16.msra.mxu0 %v266
  %480 = vmatpush.bf16.msra.mxu0 %v265
  %481 = vmatpush.bf16.msra.mxu0 %v264
  %482 = vmatpush.bf16.msra.mxu0 %v263
  %483 = vmatpush.bf16.msra.mxu0 %v262
  %484 = vmatpush.bf16.msra.mxu0 %v261
  %485 = vmatmul.bf16.gmra.mxu0 %v469
  %v486 = vpop.f32.mrf.mxu0
  %v487 = vadd.f32 0.0, %v486
  %v488 = vpop.f32.mrf.mxu0
  %v489 = vadd.f32 0.0, %v488
  %490 = vdwg.mxu0
  %491 = vmatpush.bf16.msra.mxu0 %v276
  %492 = vmatpush.bf16.msra.mxu0 %v275
  %493 = vmatpush.bf16.msra.mxu0 %v274
  %494 = vmatpush.bf16.msra.mxu0 %v273
  %495 = vmatpush.bf16.msra.mxu0 %v272
  %496 = vmatpush.bf16.msra.mxu0 %v271
  %497 = vmatpush.bf16.msra.mxu0 %v270
  %498 = vmatpush.bf16.msra.mxu0 %v269
  %499 = vmatmul.bf16.gmra.mxu0 %v470
  %v500 = vpop.f32.mrf.mxu0
  %v501 = vadd.f32 %v487, %v500
  %v502 = vpop.f32.mrf.mxu0
  %v503 = vadd.f32 %v489, %v502
  %504 = vdwg.mxu0
  %505 = vmatpush.bf16.msra.mxu0 %v284
  %506 = vmatpush.bf16.msra.mxu0 %v283
  %507 = vmatpush.bf16.msra.mxu0 %v282
  %508 = vmatpush.bf16.msra.mxu0 %v281
  %509 = vmatpush.bf16.msra.mxu0 %v280
  %510 = vmatpush.bf16.msra.mxu0 %v279
  %511 = vmatpush.bf16.msra.mxu0 %v278
  %512 = vmatpush.bf16.msra.mxu0 %v277
  %513 = vmatmul.bf16.gmra.mxu0 %v471
  %v514 = vpop.f32.mrf.mxu0
  %v515 = vadd.f32 %v501, %v514
  %v516 = vpop.f32.mrf.mxu0
  %v517 = vadd.f32 %v503, %v516
  %518 = vdwg.mxu0
  %519 = vmatpush.bf16.msra.mxu0 %v292
  %520 = vmatpush.bf16.msra.mxu0 %v291
  %521 = vmatpush.bf16.msra.mxu0 %v290
  %522 = vmatpush.bf16.msra.mxu0 %v289
  %523 = vmatpush.bf16.msra.mxu0 %v288
  %524 = vmatpush.bf16.msra.mxu0 %v287
  %525 = vmatpush.bf16.msra.mxu0 %v286
  %526 = vmatpush.bf16.msra.mxu0 %v285
  %527 = vmatmul.bf16.gmra.mxu0 %v472
  %v528 = vpop.f32.mrf.mxu0
  %v529 = vadd.f32 %v515, %v528
  %v530 = vpop.f32.mrf.mxu0
  %v531 = vadd.f32 %v517, %v530
  %532 = vdwg.mxu0
  %v537 = vunpack.c.l.b16 %v39
  %v538 = vunpack.c.h.b16 %v39
  %v539 = vunpack.c.l.b16 %v40
  %v540 = vunpack.c.h.b16 %v40
  %v541 = vunpack.c.l.b16 %v47
  %v542 = vunpack.c.h.b16 %v47
  %v543 = vunpack.c.l.b16 %v48
  %v544 = vunpack.c.h.b16 %v48
  %v545 = vpack.c.b16 %v541, %v537
  %v546 = vpack.c.b16 %v542, %v538
  %v547 = vpack.c.b16 %v543, %v539
  %v548 = vpack.c.b16 %v544, %v540
  %553 = vmatpush.bf16.msra.mxu0 %v268
  %554 = vmatpush.bf16.msra.mxu0 %v267
  %555 = vmatpush.bf16.msra.mxu0 %v266
  %556 = vmatpush.bf16.msra.mxu0 %v265
  %557 = vmatpush.bf16.msra.mxu0 %v264
  %558 = vmatpush.bf16.msra.mxu0 %v263
  %559 = vmatpush.bf16.msra.mxu0 %v262
  %560 = vmatpush.bf16.msra.mxu0 %v261
  %561 = vmatmul.bf16.gmra.mxu0 %v545
  %v562 = vpop.f32.mrf.mxu0
  %v563 = vadd.f32 0.0, %v562
  %v564 = vpop.f32.mrf.mxu0
  %v565 = vadd.f32 0.0, %v564
  %566 = vdwg.mxu0
  %567 = vmatpush.bf16.msra.mxu0 %v276
  %568 = vmatpush.bf16.msra.mxu0 %v275
  %569 = vmatpush.bf16.msra.mxu0 %v274
  %570 = vmatpush.bf16.msra.mxu0 %v273
  %571 = vmatpush.bf16.msra.mxu0 %v272
  %572 = vmatpush.bf16.msra.mxu0 %v271
  %573 = vmatpush.bf16.msra.mxu0 %v270
  %574 = vmatpush.bf16.msra.mxu0 %v269
  %575 = vmatmul.bf16.gmra.mxu0 %v546
  %v576 = vpop.f32.mrf.mxu0
  %v577 = vadd.f32 %v563, %v576
  %v578 = vpop.f32.mrf.mxu0
  %v579 = vadd.f32 %v565, %v578
  %580 = vdwg.mxu0
  %581 = vmatpush.bf16.msra.mxu0 %v284
  %582 = vmatpush.bf16.msra.mxu0 %v283
  %583 = vmatpush.bf16.msra.mxu0 %v282
  %584 = vmatpush.bf16.msra.mxu0 %v281
  %585 = vmatpush.bf16.msra.mxu0 %v280
  %586 = vmatpush.bf16.msra.mxu0 %v279
  %587 = vmatpush.bf16.msra.mxu0 %v278
  %588 = vmatpush.bf16.msra.mxu0 %v277
  %589 = vmatmul.bf16.gmra.mxu0 %v547
  %v590 = vpop.f32.mrf.mxu0
  %v591 = vadd.f32 %v577, %v590
  %v592 = vpop.f32.mrf.mxu0
  %v593 = vadd.f32 %v579, %v592
  %594 = vdwg.mxu0
  %595 = vmatpush.bf16.msra.mxu0 %v292
  %596 = vmatpush.bf16.msra.mxu0 %v291
  %597 = vmatpush.bf16.msra.mxu0 %v290
  %598 = vmatpush.bf16.msra.mxu0 %v289
  %599 = vmatpush.bf16.msra.mxu0 %v288
  %600 = vmatpush.bf16.msra.mxu0 %v287
  %601 = vmatpush.bf16.msra.mxu0 %v286
  %602 = vmatpush.bf16.msra.mxu0 %v285
  %603 = vmatmul.bf16.gmra.mxu0 %v548
  %v604 = vpop.f32.mrf.mxu0
  %v605 = vadd.f32 %v591, %v604
  %v606 = vpop.f32.mrf.mxu0
  %v607 = vadd.f32 %v593, %v606
  %608 = vdwg.mxu0
  %v609 = vld [vmem:[%s2] sm:$0xf]
  %v611 = vperm.slane %v609, 0
  %v612 = vperm.slane %v609, 1
  %v613 = vperm.slane %v609, 2
  %v614 = vperm.slane %v609, 3
  %v619 = vadd.f32 %v377, %v611
  %v620 = vadd.f32 %v453, %v612
  %v621 = vadd.f32 %v529, %v613
  %v622 = vadd.f32 %v605, %v614
  %v623 = vadd.f32 %v379, %v611
  %v624 = vadd.f32 %v455, %v612
  %v625 = vadd.f32 %v531, %v613
  %v626 = vadd.f32 %v607, %v614
  %v627 = vmax.f32 %v619, 0.0
  %v628 = vmax.f32 %v620, 0.0
  %v629 = vmax.f32 %v621, 0.0
  %v630 = vmax.f32 %v622, 0.0
  %v631 = vmax.f32 %v623, 0.0
  %v632 = vmax.f32 %v624, 0.0
  %v633 = vmax.f32 %v625, 0.0
  %v634 = vmax.f32 %v626, 0.0
  %v635 = vpack.c.bf16 %v631, %v627
  %v636 = vpack.c.bf16 %v632, %v628
  %v637 = vpack.c.bf16 %v633, %v629
  %v638 = vpack.c.bf16 %v634, %v630
  %v639 = vld [vmem:[%s3] sm:$0xf]
  %v640 = vld [vmem:[%s3 + $0x4] sm:$0xf]
  %v641 = vld [vmem:[%s3 + $0x8] sm:$0xf]
  %v642 = vld [vmem:[%s3 + $0xc] sm:$0xf]
  %v643 = vld [vmem:[%s3 + $0x10] sm:$0xf]
  %v644 = vld [vmem:[%s3 + $0x14] sm:$0xf]
  %v645 = vld [vmem:[%s3 + $0x18] sm:$0xf]
  %v646 = vld [vmem:[%s3 + $0x1c] sm:$0xf]
  %v647 = vld [vmem:[%s3 + $0x20] sm:$0xf]
  %v648 = vld [vmem:[%s3 + $0x24] sm:$0xf]
  %v649 = vld [vmem:[%s3 + $0x28] sm:$0xf]
  %v650 = vld [vmem:[%s3 + $0x2c] sm:$0xf]
  %v651 = vld [vmem:[%s3 + $0x30] sm:$0xf]
  %v652 = vld [vmem:[%s3 + $0x34] sm:$0xf]
  %v653 = vld [vmem:[%s3 + $0x38] sm:$0xf]
  %v654 = vld [vmem:[%s3 + $0x3c] sm:$0xf]
  %v655 = vld [vmem:[%s3 + $0x40] sm:$0xf]
  %v656 = vld [vmem:[%s3 + $0x44] sm:$0xf]
  %v657 = vld [vmem:[%s3 + $0x48] sm:$0xf]
  %v658 = vld [vmem:[%s3 + $0x4c] sm:$0xf]
  %v659 = vld [vmem:[%s3 + $0x50] sm:$0xf]
  %v660 = vld [vmem:[%s3 + $0x54] sm:$0xf]
  %v661 = vld [vmem:[%s3 + $0x58] sm:$0xf]
  %v662 = vld [vmem:[%s3 + $0x5c] sm:$0xf]
  %v663 = vld [vmem:[%s3 + $0x60] sm:$0xf]
  %v664 = vld [vmem:[%s3 + $0x64] sm:$0xf]
  %v665 = vld [vmem:[%s3 + $0x68] sm:$0xf]
  %v666 = vld [vmem:[%s3 + $0x6c] sm:$0xf]
  %v667 = vld [vmem:[%s3 + $0x70] sm:$0xf]
  %v668 = vld [vmem:[%s3 + $0x74] sm:$0xf]
  %v669 = vld [vmem:[%s3 + $0x78] sm:$0xf]
  %v670 = vld [vmem:[%s3 + $0x7c] sm:$0xf]
  %v671 = vld [vmem:[%s3 + $0x80] sm:$0xf]
  %v672 = vld [vmem:[%s3 + $0x84] sm:$0xf]
  %v673 = vld [vmem:[%s3 + $0x88] sm:$0xf]
  %v674 = vld [vmem:[%s3 + $0x8c] sm:$0xf]
  %v675 = vld [vmem:[%s3 + $0x90] sm:$0xf]
  %v676 = vld [vmem:[%s3 + $0x94] sm:$0xf]
  %v677 = vld [vmem:[%s3 + $0x98] sm:$0xf]
  %v678 = vld [vmem:[%s3 + $0x9c] sm:$0xf]
  %v679 = vld [vmem:[%s3 + $0xa0] sm:$0xf]
  %v680 = vld [vmem:[%s3 + $0xa4] sm:$0xf]
  %v681 = vld [vmem:[%s3 + $0xa8] sm:$0xf]
  %v682 = vld [vmem:[%s3 + $0xac] sm:$0xf]
  %v683 = vld [vmem:[%s3 + $0xb0] sm:$0xf]
  %v684 = vld [vmem:[%s3 + $0xb4] sm:$0xf]
  %v685 = vld [vmem:[%s3 + $0xb8] sm:$0xf]
  %v686 = vld [vmem:[%s3 + $0xbc] sm:$0xf]
  %v687 = vld [vmem:[%s3 + $0xc0] sm:$0xf]
  %v688 = vld [vmem:[%s3 + $0xc4] sm:$0xf]
  %v689 = vld [vmem:[%s3 + $0xc8] sm:$0xf]
  %v690 = vld [vmem:[%s3 + $0xcc] sm:$0xf]
  %v691 = vld [vmem:[%s3 + $0xd0] sm:$0xf]
  %v692 = vld [vmem:[%s3 + $0xd4] sm:$0xf]
  %v693 = vld [vmem:[%s3 + $0xd8] sm:$0xf]
  %v694 = vld [vmem:[%s3 + $0xdc] sm:$0xf]
  %v695 = vld [vmem:[%s3 + $0xe0] sm:$0xf]
  %v696 = vld [vmem:[%s3 + $0xe4] sm:$0xf]
  %v697 = vld [vmem:[%s3 + $0xe8] sm:$0xf]
  %v698 = vld [vmem:[%s3 + $0xec] sm:$0xf]
  %v699 = vld [vmem:[%s3 + $0xf0] sm:$0xf]
  %v700 = vld [vmem:[%s3 + $0xf4] sm:$0xf]
  %v701 = vld [vmem:[%s3 + $0xf8] sm:$0xf]
  %v702 = vld [vmem:[%s3 + $0xfc] sm:$0xf]
  %v703 = vld [vmem:[%s4] sm:$0x1]
  %v705 = vperm.slane %v703, 0
  %v771 = vunpack.c.l.b16 %v639
  %v772 = vunpack.c.l.b16 %v640
  %v773 = vunpack.c.l.b16 %v641
  %v774 = vunpack.c.l.b16 %v642
  %v775 = vunpack.c.l.b16 %v643
  %v776 = vunpack.c.l.b16 %v644
  %v777 = vunpack.c.l.b16 %v645
  %v778 = vunpack.c.l.b16 %v646
  %v779 = vunpack.c.l.b16 %v647
  %v780 = vunpack.c.l.b16 %v648
  %v781 = vunpack.c.l.b16 %v649
  %v782 = vunpack.c.l.b16 %v650
  %v783 = vunpack.c.l.b16 %v651
  %v784 = vunpack.c.l.b16 %v652
  %v785 = vunpack.c.l.b16 %v653
  %v786 = vunpack.c.l.b16 %v654
  %v787 = vunpack.c.l.b16 %v655
  %v788 = vunpack.c.l.b16 %v656
  %v789 = vunpack.c.l.b16 %v657
  %v790 = vunpack.c.l.b16 %v658
  %v791 = vunpack.c.l.b16 %v659
  %v792 = vunpack.c.l.b16 %v660
  %v793 = vunpack.c.l.b16 %v661
  %v794 = vunpack.c.l.b16 %v662
  %v795 = vunpack.c.l.b16 %v663
  %v796 = vunpack.c.l.b16 %v664
  %v797 = vunpack.c.l.b16 %v665
  %v798 = vunpack.c.l.b16 %v666
  %v799 = vunpack.c.l.b16 %v667
  %v800 = vunpack.c.l.b16 %v668
  %v801 = vunpack.c.l.b16 %v669
  %v802 = vunpack.c.l.b16 %v670
  %v803 = vunpack.c.l.b16 %v671
  %v804 = vunpack.c.l.b16 %v672
  %v805 = vunpack.c.l.b16 %v673
  %v806 = vunpack.c.l.b16 %v674
  %v807 = vunpack.c.l.b16 %v675
  %v808 = vunpack.c.l.b16 %v676
  %v809 = vunpack.c.l.b16 %v677
  %v810 = vunpack.c.l.b16 %v678
  %v811 = vunpack.c.l.b16 %v679
  %v812 = vunpack.c.l.b16 %v680
  %v813 = vunpack.c.l.b16 %v681
  %v814 = vunpack.c.l.b16 %v682
  %v815 = vunpack.c.l.b16 %v683
  %v816 = vunpack.c.l.b16 %v684
  %v817 = vunpack.c.l.b16 %v685
  %v818 = vunpack.c.l.b16 %v686
  %v819 = vunpack.c.l.b16 %v687
  %v820 = vunpack.c.l.b16 %v688
  %v821 = vunpack.c.l.b16 %v689
  %v822 = vunpack.c.l.b16 %v690
  %v823 = vunpack.c.l.b16 %v691
  %v824 = vunpack.c.l.b16 %v692
  %v825 = vunpack.c.l.b16 %v693
  %v826 = vunpack.c.l.b16 %v694
  %v827 = vunpack.c.l.b16 %v695
  %v828 = vunpack.c.l.b16 %v696
  %v829 = vunpack.c.l.b16 %v697
  %v830 = vunpack.c.l.b16 %v698
  %v831 = vunpack.c.l.b16 %v699
  %v832 = vunpack.c.l.b16 %v700
  %v833 = vunpack.c.l.b16 %v701
  %v834 = vunpack.c.l.b16 %v702
  %v835 = vpack.c.b16 %v772, %v771
  %v836 = vpack.c.b16 %v774, %v773
  %v837 = vpack.c.b16 %v776, %v775
  %v838 = vpack.c.b16 %v778, %v777
  %v839 = vpack.c.b16 %v780, %v779
  %v840 = vpack.c.b16 %v782, %v781
  %v841 = vpack.c.b16 %v784, %v783
  %v842 = vpack.c.b16 %v786, %v785
  %v843 = vpack.c.b16 %v788, %v787
  %v844 = vpack.c.b16 %v790, %v789
  %v845 = vpack.c.b16 %v792, %v791
  %v846 = vpack.c.b16 %v794, %v793
  %v847 = vpack.c.b16 %v796, %v795
  %v848 = vpack.c.b16 %v798, %v797
  %v849 = vpack.c.b16 %v800, %v799
  %v850 = vpack.c.b16 %v802, %v801
  %v851 = vpack.c.b16 %v804, %v803
  %v852 = vpack.c.b16 %v806, %v805
  %v853 = vpack.c.b16 %v808, %v807
  %v854 = vpack.c.b16 %v810, %v809
  %v855 = vpack.c.b16 %v812, %v811
  %v856 = vpack.c.b16 %v814, %v813
  %v857 = vpack.c.b16 %v816, %v815
  %v858 = vpack.c.b16 %v818, %v817
  %v859 = vpack.c.b16 %v820, %v819
  %v860 = vpack.c.b16 %v822, %v821
  %v861 = vpack.c.b16 %v824, %v823
  %v862 = vpack.c.b16 %v826, %v825
  %v863 = vpack.c.b16 %v828, %v827
  %v864 = vpack.c.b16 %v830, %v829
  %v865 = vpack.c.b16 %v832, %v831
  %v866 = vpack.c.b16 %v834, %v833
  %899 = vmatpush.bf16.msra.mxu0 %v842
  %900 = vmatpush.bf16.msra.mxu0 %v841
  %901 = vmatpush.bf16.msra.mxu0 %v840
  %902 = vmatpush.bf16.msra.mxu0 %v839
  %903 = vmatpush.bf16.msra.mxu0 %v838
  %904 = vmatpush.bf16.msra.mxu0 %v837
  %905 = vmatpush.bf16.msra.mxu0 %v836
  %906 = vmatpush.bf16.msra.mxu0 %v835
  %907 = vmatmul.bf16.gmra.mxu0 %v635
  %v908 = vpop.f32.mrf.mxu0
  %v909 = vadd.f32 %v705, %v908
  %v910 = vpop.f32.mrf.mxu0
  %v911 = vadd.f32 %v705, %v910
  %912 = vdwg.mxu0
  %913 = vmatpush.bf16.msra.mxu0 %v850
  %914 = vmatpush.bf16.msra.mxu0 %v849
  %915 = vmatpush.bf16.msra.mxu0 %v848
  %916 = vmatpush.bf16.msra.mxu0 %v847
  %917 = vmatpush.bf16.msra.mxu0 %v846
  %918 = vmatpush.bf16.msra.mxu0 %v845
  %919 = vmatpush.bf16.msra.mxu0 %v844
  %920 = vmatpush.bf16.msra.mxu0 %v843
  %921 = vmatmul.bf16.gmra.mxu0 %v636
  %v922 = vpop.f32.mrf.mxu0
  %v923 = vadd.f32 %v909, %v922
  %v924 = vpop.f32.mrf.mxu0
  %v925 = vadd.f32 %v911, %v924
  %926 = vdwg.mxu0
  %927 = vmatpush.bf16.msra.mxu0 %v858
  %928 = vmatpush.bf16.msra.mxu0 %v857
  %929 = vmatpush.bf16.msra.mxu0 %v856
  %930 = vmatpush.bf16.msra.mxu0 %v855
  %931 = vmatpush.bf16.msra.mxu0 %v854
  %932 = vmatpush.bf16.msra.mxu0 %v853
  %933 = vmatpush.bf16.msra.mxu0 %v852
  %934 = vmatpush.bf16.msra.mxu0 %v851
  %935 = vmatmul.bf16.gmra.mxu0 %v637
  %v936 = vpop.f32.mrf.mxu0
  %v937 = vadd.f32 %v923, %v936
  %v938 = vpop.f32.mrf.mxu0
  %v939 = vadd.f32 %v925, %v938
  %940 = vdwg.mxu0
  %941 = vmatpush.bf16.msra.mxu0 %v866
  %942 = vmatpush.bf16.msra.mxu0 %v865
  %943 = vmatpush.bf16.msra.mxu0 %v864
  %944 = vmatpush.bf16.msra.mxu0 %v863
  %945 = vmatpush.bf16.msra.mxu0 %v862
  %946 = vmatpush.bf16.msra.mxu0 %v861
  %947 = vmatpush.bf16.msra.mxu0 %v860
  %948 = vmatpush.bf16.msra.mxu0 %v859
  %949 = vmatmul.bf16.gmra.mxu0 %v638
  %v950 = vpop.f32.mrf.mxu0
  %v951 = vadd.f32 %v937, %v950
  %v952 = vpop.f32.mrf.mxu0
  %v953 = vadd.f32 %v939, %v952
  %954 = vdwg.mxu0
  %v955 = vmax.f32 %v951, 0.0
  %v956 = vmax.f32 %v953, 0.0
  %v957 = vpack.c.bf16 %v956, %v955
  %v958 = vld [vmem:[%s5] sm:$0xf]
  %v959 = vld [vmem:[%s5 + $0x4] sm:$0xf]
  %v960 = vld [vmem:[%s5 + $0x8] sm:$0xf]
  %v961 = vld [vmem:[%s5 + $0xc] sm:$0xf]
  %v962 = vld [vmem:[%s5 + $0x10] sm:$0xf]
  %v963 = vld [vmem:[%s5 + $0x14] sm:$0xf]
  %v964 = vld [vmem:[%s5 + $0x18] sm:$0xf]
  %v965 = vld [vmem:[%s5 + $0x1c] sm:$0xf]
  %v966 = vld [vmem:[%s6] sm:$0x1]
  %v968 = vperm.slane %v966, 0
  %v978 = vunpack.c.l.b16 %v958
  %v979 = vunpack.c.l.b16 %v959
  %v980 = vunpack.c.l.b16 %v960
  %v981 = vunpack.c.l.b16 %v961
  %v982 = vunpack.c.l.b16 %v962
  %v983 = vunpack.c.l.b16 %v963
  %v984 = vunpack.c.l.b16 %v964
  %v985 = vunpack.c.l.b16 %v965
  %v986 = vpack.c.b16 %v979, %v978
  %v987 = vpack.c.b16 %v981, %v980
  %v988 = vpack.c.b16 %v983, %v982
  %v989 = vpack.c.b16 %v985, %v984
  %vm994 = vcmask 523264
  %v996 = vsel %vm994, %v957, 0
  %998 = vmatpush.bf16.msra.mxu0 0
  %999 = vmatpush.bf16.msra.mxu0 0
  %1000 = vmatpush.bf16.msra.mxu0 0
  %1001 = vmatpush.bf16.msra.mxu0 0
  %1002 = vmatpush.bf16.msra.mxu0 %v989
  %1003 = vmatpush.bf16.msra.mxu0 %v988
  %1004 = vmatpush.bf16.msra.mxu0 %v987
  %1005 = vmatpush.bf16.msra.mxu0 %v986
  %1006 = vmatmul.bf16.gmra.mxu0 %v996
  %v1007 = vpop.f32.mrf.mxu0
  %v1008 = vadd.f32 %v968, %v1007
  %v1009 = vpop.f32.mrf.mxu0
  %v1010 = vadd.f32 %v968, %v1009
  %1011 = vdwg.mxu0
  %v1012 = vmax.f32 %v1008, 0.0
  %v1013 = vmax.f32 %v1010, 0.0
  %v1014 = vpack.c.bf16 %v1013, %v1012
  %v1015 = vld [vmem:[%s7] sm:$0xf]
  %v1016 = vld [vmem:[%s7 + $0x4] sm:$0xf]
  %v1017 = vld [vmem:[%s7 + $0x8] sm:$0xf]
  %v1018 = vld [vmem:[%s7 + $0xc] sm:$0xf]
  %v1019 = vld [vmem:[%s8] sm:$0x1]
  %v1021 = vperm.slane %v1019, 0
  %v1027 = vunpack.c.l.b16 %v1015
  %v1028 = vunpack.c.l.b16 %v1016
  %v1029 = vunpack.c.l.b16 %v1017
  %v1030 = vunpack.c.l.b16 %v1018
  %v1031 = vpack.c.b16 %v1028, %v1027
  %v1032 = vpack.c.b16 %v1030, %v1029
  %vm1035 = vcmask 261120
  %v1037 = vsel %vm1035, %v1014, 0
  %1039 = vmatpush.bf16.msra.mxu0 0
  %1040 = vmatpush.bf16.msra.mxu0 0
  %1041 = vmatpush.bf16.msra.mxu0 0
  %1042 = vmatpush.bf16.msra.mxu0 0
  %1043 = vmatpush.bf16.msra.mxu0 0
  %1044 = vmatpush.bf16.msra.mxu0 0
  %1045 = vmatpush.bf16.msra.mxu0 %v1032
  %1046 = vmatpush.bf16.msra.mxu0 %v1031
  %1047 = vmatmul.bf16.gmra.mxu0 %v1037
  %v1048 = vpop.f32.mrf.mxu0
  %v1049 = vadd.f32 %v1021, %v1048
  %v1050 = vpop.f32.mrf.mxu0
  %v1051 = vadd.f32 %v1021, %v1050
  %1052 = vdwg.mxu0
  %1055 = vrot.lane.b32.xlu0 %v1012, 64
  %v1056 = vpop.permute.xlu0 %1055
  %1057 = vrot.lane.b32.xlu0 %v1013, 64
  %v1058 = vpop.permute.xlu0 %1057
  %1063 = vrot.lane.b32.xlu0 %v1049, 96
  %v1064 = vpop.permute.xlu0 %1063
  %1065 = vrot.lane.b32.xlu0 %v1051, 96
  %v1066 = vpop.permute.xlu0 %1065
  %v1069 = vsel %vm994, %v955, %v1056
  %v1070 = vsel %vm994, %v956, %v1058
  %vm1071 = vcmask 785408
  %v1072 = vsel %vm1071, %v1069, %v1064
  %v1073 = vsel %vm1071, %v1070, %v1066
  %1074 = vst [vmem:[%s9] sm:$0xff] %v1072
  %1075 = vst [vmem:[%s9 + $0x8] sm:$0xff] %v1073
  // Predicated region
  $region38: #{init_encoder_mlp_forward.1} parent=0 // pred_check
    _
  $region39: #{init_encoder_mlp_forward.1} parent=0 // pred_check_branch
    %1077 = sbr.rel (0) target = $region41
  $region40: #{init_encoder_mlp_forward.1} parent=0 // pred_region
    _
  $region41: #{init_encoder_mlp_forward.1} parent=0 // pred_fallthru
    _
  // Predicated region
  $region42: #{init_encoder_mlp_forward.1} parent=0 // pred_check
    _
  $region43: #{init_encoder_mlp_forward.1} parent=0 // pred_check_branch
    %1079 = sbr.rel (0) target = $region45
  $region44: #{init_encoder_mlp_forward.1} parent=0 // pred_region
    _
  $region45: #{init_encoder_mlp_forward.1} parent=0 // pred_fallthru
    _

</llo_original>
